<compile_context>
chip_gen: v7x
topology: tpu7x:2x2x1
jax: 0.10.0
libtpu: 0.0.40
codegen_flags: <defaults>
</compile_context>

<pallas_src>
import jax
import jax.numpy as jnp
from jax.experimental import pallas as pl
from jax.experimental.pallas import tpu as pltpu


def _itm_head_kernel(x_ref, w_ref, b_ref, o_ref):
    # x_ref: [TILE_B, H], w_ref: [H, 2], b_ref: [1, 2], o_ref: [TILE_B, 2]
    acc = jnp.dot(x_ref[...], w_ref[...], preferred_element_type=jnp.float32)
    o_ref[...] = (acc + b_ref[...].astype(jnp.float32)).astype(o_ref.dtype)


def _device_info():
    """(is_v7x, vmem_capacity_bytes) with conservative fallbacks."""
    kind = ""
    try:
        kind = jax.devices()[0].device_kind.lower()
    except Exception:
        pass
    is_v7x = "v7" in kind
    vmem = None
    try:
        vmem = int(pltpu.get_tpu_info().vmem_capacity_bytes)
    except Exception:
        vmem = None
    if vmem is None:
        vmem = (64 if is_v7x else 128) * 1024 * 1024
    return is_v7x, vmem


def _round_up(x, m):
    return -(-x // m) * m


def _choose_tile_b(batch, hidden, itemsize, tile_budget_bytes, two_cores):
    """Largest well-aligned batch tile whose x block fits the per-buffer budget."""
    # Sublane packing: 8 rows for 32-bit, 16 for 16-bit, 32 for 8-bit dtypes.
    packing = max(8, 32 // max(1, itemsize))
    max_rows = max(packing, tile_budget_bytes // max(1, hidden * itemsize))
    tile = min(2048, max_rows)
    align = 256 if tile >= 256 else packing
    tile = max(packing, (tile // align) * align)
    b_ceil = _round_up(batch, packing)
    if two_cores and b_ceil > packing:
        # Guarantee >= 2 balanced grid steps so both v7x TensorCores get work.
        half = _round_up(pl.cdiv(b_ceil, 2), 256 if b_ceil >= 512 else packing)
        tile = min(tile, max(packing, half))
    return min(tile, b_ceil)


@jax.jit
def itm_head(x, w, b):
    """ITMHead forward: x @ w + b with w = fc.weight.T ([H,2]), b = fc.bias."""
    B, H = x.shape
    # Keep the matmul on the native MXU path for x's dtype (f32 accumulate in-kernel).
    w = w.astype(x.dtype)
    b = jnp.reshape(b, (1, 2)).astype(x.dtype)

    itemsize = jnp.dtype(x.dtype).itemsize
    is_v7x, vmem_bytes = _device_info()
    small_vmem = is_v7x or vmem_bytes <= 96 * 1024 * 1024

    if small_vmem:
        tile_budget = 10 * 1024 * 1024   # 3-deep buffering -> ~30 MiB of x in flight
        vmem_limit = 40 * 1024 * 1024
        n_buffers = 3
    else:
        tile_budget = 16 * 1024 * 1024   # double-buffered -> 32 MiB of x in flight
        vmem_limit = 48 * 1024 * 1024
        n_buffers = 2

    tile_b = _choose_tile_b(B, H, itemsize, tile_budget, two_cores=is_v7x)
    grid = (pl.cdiv(B, tile_b),)   # ragged last block; no host-side padding of x

    x_spec_kwargs = {}
    if n_buffers != 2:
        x_spec_kwargs["pipeline_mode"] = pl.Buffered(n_buffers)
    x_spec = pl.BlockSpec((tile_b, H), lambda i: (i, 0), **x_spec_kwargs)

    # Real 2-TC split on v7x; plain "parallel" elsewhere (single-TC v5e/v6e).
    batch_sem = getattr(pltpu, "CORE_PARALLEL", "parallel") if is_v7x else "parallel"

    cost = pl.CostEstimate(
        flops=2 * B * H * 2,
        transcendentals=0,
        bytes_accessed=(B * H + H * 2 + 2 + B * 2) * itemsize,
    )

    return pl.pallas_call(
        _itm_head_kernel,
        out_shape=jax.ShapeDtypeStruct((B, 2), x.dtype),
        grid_spec=pl.GridSpec(
            grid=grid,
            in_specs=[
                x_spec,                                   # streamed x tiles
                pl.BlockSpec((H, 2), lambda i: (0, 0)),   # resident weight
                pl.BlockSpec((1, 2), lambda i: (0, 0)),   # resident bias
            ],
            out_specs=pl.BlockSpec((tile_b, 2), lambda i: (i, 0)),
        ),
        compiler_params=pltpu.CompilerParams(
            dimension_semantics=(batch_sem,),
            vmem_limit_bytes=vmem_limit,
        ),
        cost_estimate=cost,
    )(x, w, b)


if __name__ == "__main__":
    hidden_size = 32
    batch = 8
    # NOTE: at shapes this tiny, plain `x @ w + b` in XLA would win (launch and
    # per-grid-step overhead dominate); the Pallas path pays off at production
    # batch sizes. We still exercise the kernel here.

    key = jax.random.PRNGKey(0)
    kx, kw, kb = jax.random.split(key, 3)

    # Deterministic init mimicking nn.Linear default: U(-1/sqrt(H), 1/sqrt(H)).
    bound = 1.0 / (hidden_size ** 0.5)
    w = jax.random.uniform(kw, (hidden_size, 2), jnp.float32, -bound, bound)
    b = jax.random.uniform(kb, (2,), jnp.float32, -bound, bound)
    x = jax.random.normal(kx, (batch, hidden_size), jnp.float32)

    out = itm_head(x, w, b)
    jax.block_until_ready(out)
    ref = x @ w + b[None, :]
    assert out.shape == (batch, 2)
    assert jnp.allclose(out, ref, atol=1e-5, rtol=1e-5)

    # Exercise the ragged (non-tile-aligned) batch path: no host-side padding,
    # the OOB rows of the trailing block are dropped by Pallas.
    batch2 = 13
    x2 = jax.random.normal(kx, (batch2, hidden_size), jnp.float32)
    out2 = itm_head(x2, w, b)
    jax.block_until_ready(out2)
    ref2 = x2 @ w + b[None, :]
    assert out2.shape == (batch2, 2)
    assert jnp.allclose(out2, ref2, atol=1e-5, rtol=1e-5)

    print("KERNEL_OK")
</pallas_src>

<mosaic_0001>
module attributes {stable_mosaic.version = 11 : i64} {
  func.func @_itm_head_kernel(%arg0: i32, %arg1: memref<8x32xf32, #tpu.memory_space<vmem>>, %arg2: memref<32x2xf32, #tpu.memory_space<vmem>>, %arg3: memref<1x2xf32, #tpu.memory_space<vmem>>, %arg4: memref<8x2xf32, #tpu.memory_space<vmem>>) attributes {dimension_semantics = [#tpu.dimension_semantics<parallel>], iteration_bounds = array<i64: 1>, scalar_prefetch = 0 : i64, scratch_operands = 0 : i64, tpu.core_type = #tpu.core_type<tc>, window_params = [{transform_indices = @transform_0, window_bounds = array<i64: 8, 32>}, {pipeline_mode = #tpu.pipeline_mode<synchronous>, transform_indices = @transform_1, window_bounds = array<i64: 32, 2>}, {pipeline_mode = #tpu.pipeline_mode<synchronous>, transform_indices = @transform_2, window_bounds = array<i64: 1, 2>}, {transform_indices = @transform_3, window_bounds = array<i64: 8, 2>}]} {
    %c0 = arith.constant 0 : index
    %c0_0 = arith.constant 0 : index
    %0 = vector.load %arg1[%c0, %c0_0] : memref<8x32xf32, #tpu.memory_space<vmem>>, vector<8x32xf32>
    %c0_1 = arith.constant 0 : index
    %c0_2 = arith.constant 0 : index
    %1 = vector.load %arg2[%c0_1, %c0_2] : memref<32x2xf32, #tpu.memory_space<vmem>>, vector<32x2xf32>
    %cst = arith.constant dense<0.000000e+00> : vector<8x2xf32>
    %2 = tpu.matmul %0, %1, %cst {dimension_numbers = #tpu.dot_dimension_numbers<[1], [0], [0], [1], [0, 0, 1, 1], [], []>} : vector<8x32xf32>, vector<32x2xf32>, vector<8x2xf32> -> vector<8x2xf32>
    %c0_3 = arith.constant 0 : index
    %c0_4 = arith.constant 0 : index
    %3 = vector.load %arg3[%c0_3, %c0_4] : memref<1x2xf32, #tpu.memory_space<vmem>>, vector<1x2xf32>
    %4 = vector.broadcast %3 : vector<1x2xf32> to vector<8x2xf32>
    %5 = arith.addf %2, %4 : vector<8x2xf32>
    %c0_5 = arith.constant 0 : index
    %c0_6 = arith.constant 0 : index
    %6 = vector.load %arg4[%c0_5, %c0_6] : memref<8x2xf32, #tpu.memory_space<vmem>>, vector<8x2xf32>
    tpu.vector_store %arg4[%c0_5, %c0_6], %5 {strides = array<i32>} : memref<8x2xf32, #tpu.memory_space<vmem>>, vector<8x2xf32>,
    return
  }
  func.func @transform_0(%arg0: i32) -> (i32, i32) {
    %c0_i32 = arith.constant 0 : i32
    %c0_i32_0 = arith.constant 0 : i32
    return %arg0, %c0_i32 : i32, i32
  }
  func.func @transform_1(%arg0: i32) -> (i32, i32) {
    %c0_i32 = arith.constant 0 : i32
    %c0_i32_0 = arith.constant 0 : i32
    %c0_i32_1 = arith.constant 0 : i32
    return %c0_i32, %c0_i32_0 : i32, i32
  }
  func.func @transform_2(%arg0: i32) -> (i32, i32) {
    %c0_i32 = arith.constant 0 : i32
    %c0_i32_0 = arith.constant 0 : i32
    %c0_i32_1 = arith.constant 0 : i32
    return %c0_i32, %c0_i32_0 : i32, i32
  }
  func.func @transform_3(%arg0: i32) -> (i32, i32) {
    %c0_i32 = arith.constant 0 : i32
    %c0_i32_0 = arith.constant 0 : i32
    return %arg0, %c0_i32 : i32, i32
  }
}

</mosaic_0001>

<llo_original>
// kernel: itm_head.1
$region0: #{itm_head.1}
  #allocation0 [shape = 'u32[]', space=smem, size = 0x4, offset = 0x4, fixed_abs, tag = 'smem constant byte address 0x4 - core index']
  #allocation1 [shape = 'u32[144,128]{1,0:T(1,128)}', space=vmem, size = 0x12000, scoped, tag = 'internal scratch']
  %s0 = inlined_call_operand.vmem [shape: f32[8,32], index: 0, kind: input, shape index: {}]
  %s1 = inlined_call_operand.vmem [shape: f32[32,2], index: 1, kind: input, shape index: {}]
  %s2 = inlined_call_operand.vmem [shape: f32[1,2], index: 2, kind: input, shape index: {}]
  %s3 = inlined_call_operand.vmem [shape: f32[8,2], index: 3, kind: output, shape index: {}]
  %s4 = sld [smem:[#allocation0]]
  $region22: #{itm_head.1} parent=0
    _
  %s6 = ssub.s32 1, %s4
  %s7 = scalar_select 0, %s6, %s4
  // Predicated region
  $region2: #{itm_head.1} parent=0 // pred_check
    _
  $region3: #{itm_head.1} parent=0 // pred_check_branch
    %9 = sbr.rel (0) target = $region5
  $region4: #{itm_head.1} parent=0 // pred_region
    _
  $region5: #{itm_head.1} parent=0 // pred_fallthru
    _
  // Predicated region
  $region6: #{itm_head.1} parent=0 // pred_check
    _
  $region7: #{itm_head.1} parent=0 // pred_check_branch
    %11 = sbr.rel (0) target = $region9
  $region8: #{itm_head.1} parent=0 // pred_region
    _
  $region9: #{itm_head.1} parent=0 // pred_fallthru
    _
  // Predicated region
  $region10: #{itm_head.1} parent=0 // pred_check
    _
  $region11: #{itm_head.1} parent=0 // pred_check_branch
    %13 = sbr.rel (0) target = $region13
  $region12: #{itm_head.1} parent=0 // pred_region
    _
  $region13: #{itm_head.1} parent=0 // pred_fallthru
    _
  %v14 = vld [vmem:[%s0] sm:$0xff]
  %v15 = vld [vmem:[%s1] sm:$0xff]
  %v16 = vld [vmem:[%s1 + $0x8] sm:$0xff]
  %v17 = vld [vmem:[%s1 + $0x10] sm:$0xff]
  %v18 = vld [vmem:[%s1 + $0x18] sm:$0xff]
  %v19 = vld [vmem:[%s2] sm:$0x1]
  %v21 = vlaneseq
  %v22 = vshrl.u32 %v21, 7
  %v23 = vsub.s32 0, %v22
  %v24 = vrot.slane %v19, %v23
  %vm26 = vcmask 261120
  %v28 = vsel %vm26, %v14, 0
  %30 = vmatprep.subr.mxu0 0.0
  %31 = vmatpush1.msra.mxu0 %v15
  %32 = vmatprep.subr.mxu0 0.0
  %33 = vmatpush1.msra.mxu0 %v16
  %34 = vmatprep.subr.mxu0 0.0
  %35 = vmatpush1.msra.mxu0 %v17
  %36 = vmatprep.subr.mxu0 0.0
  %37 = vmatpush1.msra.mxu0 %v18
  %38 = vmatprep.subr.mxu0 0.0
  %39 = vmatpush1.msra.mxu0 0.0
  %40 = vmatprep.subr.mxu0 0.0
  %41 = vmatpush1.msra.mxu0 0.0
  %42 = vmatprep.subr.mxu0 0.0
  %43 = vmatpush1.msra.mxu0 0.0
  %44 = vmatprep.subr.mxu0 0.0
  %45 = vmatpush1.msra.mxu0 0.0
  %46 = vmatprep.subr.mxu0 0.0
  %47 = vmatpush1.msra.mxu0 0.0
  %48 = vmatprep.subr.mxu0 0.0
  %49 = vmatpush1.msra.mxu0 0.0
  %50 = vmatprep.subr.mxu0 0.0
  %51 = vmatpush1.msra.mxu0 0.0
  %52 = vmatprep.subr.mxu0 0.0
  %53 = vmatpush1.msra.mxu0 0.0
  %54 = vmatprep.subr.mxu0 0.0
  %55 = vmatpush1.msra.mxu0 0.0
  %56 = vmatprep.subr.mxu0 0.0
  %57 = vmatpush1.msra.mxu0 0.0
  %58 = vmatprep.subr.mxu0 0.0
  %59 = vmatpush1.msra.mxu0 0.0
  %60 = vmatprep.subr.mxu0 0.0
  %61 = vmatpush1.msra.mxu0 0.0
  %62 = vmatprep.subr.mxu0 0.0
  %63 = vmatpush1.msra.mxu0 0.0
  %64 = vmatprep.subr.mxu0 0.0
  %65 = vmatpush1.msra.mxu0 0.0
  %66 = vmatprep.subr.mxu0 0.0
  %67 = vmatpush1.msra.mxu0 0.0
  %68 = vmatprep.subr.mxu0 0.0
  %69 = vmatpush1.msra.mxu0 0.0
  %70 = vmatprep.subr.mxu0 0.0
  %71 = vmatpush1.msra.mxu0 0.0
  %72 = vmatprep.subr.mxu0 0.0
  %73 = vmatpush1.msra.mxu0 0.0
  %74 = vmatprep.subr.mxu0 0.0
  %75 = vmatpush1.msra.mxu0 0.0
  %76 = vmatprep.subr.mxu0 0.0
  %77 = vmatpush1.msra.mxu0 0.0
  %78 = vmatprep.subr.mxu0 0.0
  %79 = vmatpush1.msra.mxu0 0.0
  %80 = vmatprep.subr.mxu0 0.0
  %81 = vmatpush1.msra.mxu0 0.0
  %82 = vmatprep.subr.mxu0 0.0
  %83 = vmatpush1.msra.mxu0 0.0
  %84 = vmatprep.subr.mxu0 0.0
  %85 = vmatpush1.msra.mxu0 0.0
  %86 = vmatprep.subr.mxu0 0.0
  %87 = vmatpush1.msra.mxu0 0.0
  %88 = vmatprep.subr.mxu0 0.0
  %89 = vmatpush1.msra.mxu0 0.0
  %90 = vmatprep.subr.mxu0 0.0
  %91 = vmatpush1.msra.mxu0 0.0
  %92 = vmatprep.subr.mxu0 0.0
  %93 = vmatpush1.msra.mxu0 0.0
  %94 = vmatprep.mubr.f32.mxu0 0.0
  %95 = vmatmul.mubr.f32.gmra.mrb[0].mxu0 %v28
  %v96 = vpop.f32.mrb[0].mxu0
  %v97 = vadd.f32 %v24, %v96
  %v98 = vpop.f32.mrb[0].mxu0
  %99 = vdwg.mxu0
  %vm100 = vcmask 15360
  %101 = vst.msk [vmem:[%s3] sm:$0xff] %vm100, %v97
  // Predicated region
  $region14: #{itm_head.1} parent=0 // pred_check
    _
  $region15: #{itm_head.1} parent=0 // pred_check_branch
    %103 = sbr.rel (0) target = $region17
  $region16: #{itm_head.1} parent=0 // pred_region
    _
  $region17: #{itm_head.1} parent=0 // pred_fallthru
    _
  // Predicated region
  $region18: #{itm_head.1} parent=0 // pred_check
    _
  $region19: #{itm_head.1} parent=0 // pred_check_branch
    %105 = sbr.rel (0) target = $region21
  $region20: #{itm_head.1} parent=0 // pred_region
    _
  $region21: #{itm_head.1} parent=0 // pred_fallthru
    _

</llo_original>
